<compile_context>
chip_gen: v7x
topology: tpu7x:2x2x1
jax: 0.10.0
libtpu: 0.0.40
codegen_flags: <defaults>
</compile_context>

<pallas_src>
import functools

import jax
import jax.numpy as jnp
from jax.experimental import pallas as pl
from jax.experimental.pallas import tpu as pltpu

LANE = 128      # vreg lane width
SUBLANE = 8     # vreg sublane count (f32)
HIDDEN = 128


def _round_up(n, m):
    return ((n + m - 1) // m) * m


def _dqn_kernel(x_ref, w1_ref, b1_ref, w2_ref, b2_ref, w3_ref, b3_ref, o_ref):
    """One batch tile of the fused 3-layer MLP."""
    in_size = x_ref.shape[-1]        # static (4 for CartPole)
    out_size = o_ref.shape[-1]       # static (2 for CartPole)

    x = x_ref[...]                   # (tb, in_size) f32

    # --- Layer 1: K = in_size is tiny, so skip the MXU and do broadcast MACs
    # on the VPU in f32 (bias first; bias is zero under this init anyway).
    h1 = b1_ref[...] + x[:, 0:1] * w1_ref[0:1, :]
    for k in range(1, in_size):
        h1 = h1 + x[:, k:k + 1] * w1_ref[k:k + 1, :]
    h1 = jnp.maximum(h1, 0.0)        # (tb, hidden) f32

    # --- Layer 2: full (tb,128)x(128,128) MXU matmul, bf16 in / f32 accumulate.
    cdt = w2_ref.dtype
    h2 = jnp.dot(h1.astype(cdt), w2_ref[...],
                 preferred_element_type=jnp.float32) + b2_ref[...]
    h2 = jnp.maximum(h2, 0.0)        # (tb, hidden) f32

    # --- Layer 3: w3 is zero-padded to 128 columns in VMEM for a clean MXU N;
    # slice back to out_size in-register so the HBM store stays (tb, out_size).
    logits = jnp.dot(h2.astype(cdt), w3_ref[...],
                     preferred_element_type=jnp.float32)      # (tb, 128) f32
    o_ref[...] = (logits[:, :out_size] + b3_ref[...]).astype(o_ref.dtype)


def init_dqn_params(key, input_size, output_size, hidden=HIDDEN):
    """PyTorch-layout params matching initialize_weights(): W ~ N(0, 0.01), b = 0."""
    k1, k2, k3 = jax.random.split(key, 3)
    return {
        "w1": 0.01 * jax.random.normal(k1, (hidden, input_size), jnp.float32),
        "b1": jnp.zeros((hidden,), jnp.float32),
        "w2": 0.01 * jax.random.normal(k2, (hidden, hidden), jnp.float32),
        "b2": jnp.zeros((hidden,), jnp.float32),
        "w3": 0.01 * jax.random.normal(k3, (output_size, hidden), jnp.float32),
        "b3": jnp.zeros((output_size,), jnp.float32),
    }


def prepare_params(params, weight_dtype=jnp.bfloat16):
    """Transpose to (in, out) layout for the kernel.

    * w1 stays f32 at its natural (in_size, hidden) shape (VPU layer-1 path).
    * w2 is bf16 (hidden, hidden).
    * w3 is bf16 and zero-padded to 128 output columns — VMEM-resident only
      (32 KB); the padded columns are exact no-ops and never reach HBM output.
    * Biases stay f32; b3 is unpadded (added after the in-kernel slice).
    """
    hidden, in_size = params["w1"].shape
    out_size = params["w3"].shape[0]
    out_pad = _round_up(out_size, LANE)
    w3p = jnp.pad(params["w3"].T, ((0, 0), (0, out_pad - out_size)))
    return {
        "w1": params["w1"].T.astype(jnp.float32),                     # (in, hidden)
        "b1": params["b1"].reshape(1, hidden).astype(jnp.float32),
        "w2": params["w2"].T.astype(weight_dtype),                    # (hidden, hidden)
        "b2": params["b2"].reshape(1, hidden).astype(jnp.float32),
        "w3": w3p.astype(weight_dtype),                               # (hidden, out_pad)
        "b3": params["b3"].reshape(1, out_size).astype(jnp.float32),
    }


@functools.partial(jax.jit, static_argnames=("batch_tile",))
def dqn_forward(x, prepared, batch_tile=1024):
    """Fused DQN forward. x: (B, input_size) f32 -> (B, out_size) f32.

    batch_tile: upper bound on rows per grid step.  Big tiles amortize the
    ~0.35 us per-grid-step overhead; for large batches the tile is halved so the
    "parallel" batch axis has >= 2 steps (both v7x TensorCores get work).
    """
    B, in_size = x.shape
    hidden = prepared["w2"].shape[0]
    out_pad = prepared["w3"].shape[1]
    out_size = prepared["b3"].shape[1]

    batch_tile = max(SUBLANE, _round_up(batch_tile, SUBLANE))
    tb = min(_round_up(B, SUBLANE), batch_tile)
    if B >= 2 * SUBLANE:
        # Core-count-aware tiling: keep at least two grid steps when splittable.
        tb = min(tb, _round_up(pl.cdiv(B, 2), SUBLANE))
    b_pad = _round_up(B, tb)

    # Only batch-dim padding (cheap, usually zero); no lane padding of features.
    xp = x if b_pad == B else jnp.pad(x, ((0, b_pad - B), (0, 0)))

    grid = (b_pad // tb,)
    flops = 2 * b_pad * (in_size * hidden + hidden * hidden + hidden * out_pad)
    bytes_accessed = int(
        b_pad * in_size * 4
        + sum(int(v.size) * v.dtype.itemsize for v in prepared.values())
        + b_pad * out_size * 4)

    out = pl.pallas_call(
        _dqn_kernel,
        out_shape=jax.ShapeDtypeStruct((b_pad, out_size), jnp.float32),
        grid=grid,
        in_specs=[
            pl.BlockSpec((tb, in_size), lambda i: (i, 0)),        # x batch tile
            pl.BlockSpec((in_size, hidden), lambda i: (0, 0)),    # w1 (VMEM-resident)
            pl.BlockSpec((1, hidden), lambda i: (0, 0)),          # b1
            pl.BlockSpec((hidden, hidden), lambda i: (0, 0)),     # w2
            pl.BlockSpec((1, hidden), lambda i: (0, 0)),          # b2
            pl.BlockSpec((hidden, out_pad), lambda i: (0, 0)),    # w3 (padded in VMEM only)
            pl.BlockSpec((1, out_size), lambda i: (0, 0)),        # b3
        ],
        out_specs=pl.BlockSpec((tb, out_size), lambda i: (i, 0)),
        compiler_params=pltpu.CompilerParams(
            dimension_semantics=("parallel",)),
        cost_estimate=pl.CostEstimate(
            flops=flops, transcendentals=0, bytes_accessed=bytes_accessed),
    )(xp, prepared["w1"], prepared["b1"], prepared["w2"], prepared["b2"],
      prepared["w3"], prepared["b3"])

    return out if b_pad == B else out[:B]


def dqn_reference_f32(x, params):
    """Pure f32 reference matching the PyTorch module exactly."""
    h1 = jnp.maximum(x @ params["w1"].T + params["b1"], 0.0)
    h2 = jnp.maximum(h1 @ params["w2"].T + params["b2"], 0.0)
    return h2 @ params["w3"].T + params["b3"]


def dqn_reference_mixed(x, params):
    """Reference in the kernel's exact precision recipe:
    layer 1 as f32 VPU MACs (same op order), layers 2/3 bf16 inputs + f32 accum."""
    w1t = params["w1"].T                      # (in, hidden)
    h1 = params["b1"][None, :] + x[:, 0:1] * w1t[0:1, :]
    for k in range(1, x.shape[1]):
        h1 = h1 + x[:, k:k + 1] * w1t[k:k + 1, :]
    h1 = jnp.maximum(h1, 0.0)

    def dot(a, w):
        return jnp.dot(a.astype(jnp.bfloat16), w.T.astype(jnp.bfloat16),
                       preferred_element_type=jnp.float32)

    h2 = jnp.maximum(dot(h1, params["w2"]) + params["b2"], 0.0)
    return dot(h2, params["w3"]) + params["b3"]


if __name__ == "__main__":
    # CartPole: observation dim = 4, action dim = 2.
    input_size, output_size, batch = 4, 2, 8

    key = jax.random.PRNGKey(0)
    k_params, k_x = jax.random.split(key)
    params = init_dqn_params(k_params, input_size, output_size)
    prepared = prepare_params(params)
    x = jax.random.normal(k_x, (batch, input_size), jnp.float32)

    out = dqn_forward(x, prepared)
    out = jax.block_until_ready(out)
    assert out.shape == (batch, output_size)

    # Strict check against a reference computed in the kernel's exact precision
    # (f32 layer 1, bf16 matmul inputs with f32 accumulation for layers 2/3).
    ref_mixed = dqn_reference_mixed(x, params)
    assert jnp.allclose(out, ref_mixed, atol=2e-5, rtol=1e-4), float(
        jnp.max(jnp.abs(out - ref_mixed)))

    # Sanity check against the full-f32 PyTorch-semantics reference; bf16 weights
    # in layers 2/3 are a deliberate precision/throughput trade-off.
    ref_f32 = dqn_reference_f32(x, params)
    assert jnp.allclose(out, ref_f32, atol=1e-3, rtol=1e-2), float(
        jnp.max(jnp.abs(out - ref_f32)))

    print("KERNEL_OK")
</pallas_src>

<mosaic_0001>
module attributes {stable_mosaic.version = 11 : i64} {
  func.func @_dqn_kernel(%arg0: i32, %arg1: memref<8x4xf32, #tpu.memory_space<vmem>>, %arg2: memref<4x128xf32, #tpu.memory_space<vmem>>, %arg3: memref<1x128xf32, #tpu.memory_space<vmem>>, %arg4: memref<128x128xbf16, #tpu.memory_space<vmem>>, %arg5: memref<1x128xf32, #tpu.memory_space<vmem>>, %arg6: memref<128x128xbf16, #tpu.memory_space<vmem>>, %arg7: memref<1x2xf32, #tpu.memory_space<vmem>>, %arg8: memref<8x2xf32, #tpu.memory_space<vmem>>) attributes {dimension_semantics = [#tpu.dimension_semantics<parallel>], iteration_bounds = array<i64: 1>, scalar_prefetch = 0 : i64, scratch_operands = 0 : i64, tpu.core_type = #tpu.core_type<tc>, window_params = [{transform_indices = @transform_0, window_bounds = array<i64: 8, 4>}, {pipeline_mode = #tpu.pipeline_mode<synchronous>, transform_indices = @transform_1, window_bounds = array<i64: 4, 128>}, {pipeline_mode = #tpu.pipeline_mode<synchronous>, transform_indices = @transform_2, window_bounds = array<i64: 1, 128>}, {pipeline_mode = #tpu.pipeline_mode<synchronous>, transform_indices = @transform_3, window_bounds = array<i64: 128, 128>}, {pipeline_mode = #tpu.pipeline_mode<synchronous>, transform_indices = @transform_4, window_bounds = array<i64: 1, 128>}, {pipeline_mode = #tpu.pipeline_mode<synchronous>, transform_indices = @transform_5, window_bounds = array<i64: 128, 128>}, {pipeline_mode = #tpu.pipeline_mode<synchronous>, transform_indices = @transform_6, window_bounds = array<i64: 1, 2>}, {transform_indices = @transform_7, window_bounds = array<i64: 8, 2>}]} {
    %c0 = arith.constant 0 : index
    %c0_0 = arith.constant 0 : index
    %0 = vector.load %arg1[%c0, %c0_0] : memref<8x4xf32, #tpu.memory_space<vmem>>, vector<8x4xf32>
    %c0_1 = arith.constant 0 : index
    %c0_2 = arith.constant 0 : index
    %1 = vector.load %arg3[%c0_1, %c0_2] : memref<1x128xf32, #tpu.memory_space<vmem>>, vector<1x128xf32>
    %2 = vector.extract_strided_slice %0 {offsets = [0, 0], sizes = [8, 1], strides = [1, 1]} : vector<8x4xf32> to vector<8x1xf32>
    %c0_3 = arith.constant 0 : index
    %c0_4 = arith.constant 0 : index
    %3 = vector.load %arg2[%c0_3, %c0_4] : memref<4x128xf32, #tpu.memory_space<vmem>>, vector<1x128xf32>
    %4 = vector.broadcast %2 : vector<8x1xf32> to vector<8x128xf32>
    %5 = vector.broadcast %3 : vector<1x128xf32> to vector<8x128xf32>
    %6 = arith.mulf %4, %5 : vector<8x128xf32>
    %7 = vector.broadcast %1 : vector<1x128xf32> to vector<8x128xf32>
    %8 = arith.addf %7, %6 : vector<8x128xf32>
    %9 = vector.extract_strided_slice %0 {offsets = [0, 1], sizes = [8, 1], strides = [1, 1]} : vector<8x4xf32> to vector<8x1xf32>
    %c1 = arith.constant 1 : index
    %c0_5 = arith.constant 0 : index
    %10 = vector.load %arg2[%c1, %c0_5] : memref<4x128xf32, #tpu.memory_space<vmem>>, vector<1x128xf32>
    %11 = vector.broadcast %9 : vector<8x1xf32> to vector<8x128xf32>
    %12 = vector.broadcast %10 : vector<1x128xf32> to vector<8x128xf32>
    %13 = arith.mulf %11, %12 : vector<8x128xf32>
    %14 = arith.addf %8, %13 : vector<8x128xf32>
    %15 = vector.extract_strided_slice %0 {offsets = [0, 2], sizes = [8, 1], strides = [1, 1]} : vector<8x4xf32> to vector<8x1xf32>
    %c2 = arith.constant 2 : index
    %c0_6 = arith.constant 0 : index
    %16 = vector.load %arg2[%c2, %c0_6] : memref<4x128xf32, #tpu.memory_space<vmem>>, vector<1x128xf32>
    %17 = vector.broadcast %15 : vector<8x1xf32> to vector<8x128xf32>
    %18 = vector.broadcast %16 : vector<1x128xf32> to vector<8x128xf32>
    %19 = arith.mulf %17, %18 : vector<8x128xf32>
    %20 = arith.addf %14, %19 : vector<8x128xf32>
    %21 = vector.extract_strided_slice %0 {offsets = [0, 3], sizes = [8, 1], strides = [1, 1]} : vector<8x4xf32> to vector<8x1xf32>
    %c3 = arith.constant 3 : index
    %c0_7 = arith.constant 0 : index
    %22 = vector.load %arg2[%c3, %c0_7] : memref<4x128xf32, #tpu.memory_space<vmem>>, vector<1x128xf32>
    %23 = vector.broadcast %21 : vector<8x1xf32> to vector<8x128xf32>
    %24 = vector.broadcast %22 : vector<1x128xf32> to vector<8x128xf32>
    %25 = arith.mulf %23, %24 : vector<8x128xf32>
    %26 = arith.addf %20, %25 : vector<8x128xf32>
    %cst = arith.constant 0.000000e+00 : f32
    %27 = vector.broadcast %cst : f32 to vector<8x128xf32>
    %28 = arith.maximumf %26, %27 : vector<8x128xf32>
    %29 = arith.truncf %28 : vector<8x128xf32> to vector<8x128xbf16>
    %c0_8 = arith.constant 0 : index
    %c0_9 = arith.constant 0 : index
    %30 = vector.load %arg4[%c0_8, %c0_9] : memref<128x128xbf16, #tpu.memory_space<vmem>>, vector<128x128xbf16>
    %cst_10 = arith.constant dense<0.000000e+00> : vector<8x128xf32>
    %31 = tpu.matmul %29, %30, %cst_10 {dimension_numbers = #tpu.dot_dimension_numbers<[1], [0], [0], [1], [0, 0, 1, 1], [], []>} : vector<8x128xbf16>, vector<128x128xbf16>, vector<8x128xf32> -> vector<8x128xf32>
    %c0_11 = arith.constant 0 : index
    %c0_12 = arith.constant 0 : index
    %32 = vector.load %arg5[%c0_11, %c0_12] : memref<1x128xf32, #tpu.memory_space<vmem>>, vector<1x128xf32>
    %33 = vector.broadcast %32 : vector<1x128xf32> to vector<8x128xf32>
    %34 = arith.addf %31, %33 : vector<8x128xf32>
    %cst_13 = arith.constant 0.000000e+00 : f32
    %35 = vector.broadcast %cst_13 : f32 to vector<8x128xf32>
    %36 = arith.maximumf %34, %35 : vector<8x128xf32>
    %37 = arith.truncf %36 : vector<8x128xf32> to vector<8x128xbf16>
    %c0_14 = arith.constant 0 : index
    %c0_15 = arith.constant 0 : index
    %38 = vector.load %arg6[%c0_14, %c0_15] : memref<128x128xbf16, #tpu.memory_space<vmem>>, vector<128x128xbf16>
    %cst_16 = arith.constant dense<0.000000e+00> : vector<8x128xf32>
    %39 = tpu.matmul %37, %38, %cst_16 {dimension_numbers = #tpu.dot_dimension_numbers<[1], [0], [0], [1], [0, 0, 1, 1], [], []>} : vector<8x128xbf16>, vector<128x128xbf16>, vector<8x128xf32> -> vector<8x128xf32>
    %40 = vector.extract_strided_slice %39 {offsets = [0, 0], sizes = [8, 2], strides = [1, 1]} : vector<8x128xf32> to vector<8x2xf32>
    %c0_17 = arith.constant 0 : index
    %c0_18 = arith.constant 0 : index
    %41 = vector.load %arg7[%c0_17, %c0_18] : memref<1x2xf32, #tpu.memory_space<vmem>>, vector<1x2xf32>
    %42 = vector.broadcast %41 : vector<1x2xf32> to vector<8x2xf32>
    %43 = arith.addf %40, %42 : vector<8x2xf32>
    %c0_19 = arith.constant 0 : index
    %c0_20 = arith.constant 0 : index
    %44 = vector.load %arg8[%c0_19, %c0_20] : memref<8x2xf32, #tpu.memory_space<vmem>>, vector<8x2xf32>
    tpu.vector_store %arg8[%c0_19, %c0_20], %43 {strides = array<i32>} : memref<8x2xf32, #tpu.memory_space<vmem>>, vector<8x2xf32>,
    return
  }
  func.func @transform_0(%arg0: i32) -> (i32, i32) {
    %c0_i32 = arith.constant 0 : i32
    %c0_i32_0 = arith.constant 0 : i32
    return %arg0, %c0_i32 : i32, i32
  }
  func.func @transform_1(%arg0: i32) -> (i32, i32) {
    %c0_i32 = arith.constant 0 : i32
    %c0_i32_0 = arith.constant 0 : i32
    %c0_i32_1 = arith.constant 0 : i32
    return %c0_i32, %c0_i32_0 : i32, i32
  }
  func.func @transform_2(%arg0: i32) -> (i32, i32) {
    %c0_i32 = arith.constant 0 : i32
    %c0_i32_0 = arith.constant 0 : i32
    %c0_i32_1 = arith.constant 0 : i32
    return %c0_i32, %c0_i32_0 : i32, i32
  }
  func.func @transform_3(%arg0: i32) -> (i32, i32) {
    %c0_i32 = arith.constant 0 : i32
    %c0_i32_0 = arith.constant 0 : i32
    %c0_i32_1 = arith.constant 0 : i32
    return %c0_i32, %c0_i32_0 : i32, i32
  }
  func.func @transform_4(%arg0: i32) -> (i32, i32) {
    %c0_i32 = arith.constant 0 : i32
    %c0_i32_0 = arith.constant 0 : i32
    %c0_i32_1 = arith.constant 0 : i32
    return %c0_i32, %c0_i32_0 : i32, i32
  }
  func.func @transform_5(%arg0: i32) -> (i32, i32) {
    %c0_i32 = arith.constant 0 : i32
    %c0_i32_0 = arith.constant 0 : i32
    %c0_i32_1 = arith.constant 0 : i32
    return %c0_i32, %c0_i32_0 : i32, i32
  }
  func.func @transform_6(%arg0: i32) -> (i32, i32) {
    %c0_i32 = arith.constant 0 : i32
    %c0_i32_0 = arith.constant 0 : i32
    %c0_i32_1 = arith.constant 0 : i32
    return %c0_i32, %c0_i32_0 : i32, i32
  }
  func.func @transform_7(%arg0: i32) -> (i32, i32) {
    %c0_i32 = arith.constant 0 : i32
    %c0_i32_0 = arith.constant 0 : i32
    return %arg0, %c0_i32 : i32, i32
  }
}

</mosaic_0001>

<llo_original>
// kernel: dqn_forward.1
$region0: #{dqn_forward.1}
  #allocation0 [shape = 'u32[]', space=smem, size = 0x4, offset = 0x4, fixed_abs, tag = 'smem constant byte address 0x4 - core index']
  #allocation1 [shape = 'u32[144,128]{1,0:T(1,128)}', space=vmem, size = 0x12000, scoped, tag = 'internal scratch']
  %s0 = inlined_call_operand.vmem [shape: f32[8,4], index: 0, kind: input, shape index: {}]
  %s1 = inlined_call_operand.vmem [shape: f32[4,128], index: 1, kind: input, shape index: {}]
  %s2 = inlined_call_operand.vmem [shape: f32[1,128], index: 2, kind: input, shape index: {}]
  %s3 = inlined_call_operand.hbm [shape: bf16[128,128], index: 3, kind: input, shape index: {}]
  %s4 = inlined_call_operand.vmem [shape: f32[1,128], index: 4, kind: input, shape index: {}]
  %s5 = inlined_call_operand.hbm [shape: bf16[128,128], index: 5, kind: input, shape index: {}]
  %s6 = inlined_call_operand.vmem [shape: f32[1,2], index: 6, kind: input, shape index: {}]
  %s7 = inlined_call_operand.vmem [shape: f32[8,2], index: 7, kind: output, shape index: {}]
  %s8 = sld [smem:[#allocation0]]
  $region46: #{dqn_forward.1} parent=0
    _
  %s10 = ssub.s32 1, %s8
  %s11 = scalar_select 0, %s10, %s8
  $region1: #{dqn_forward.1} parent=0
    #allocation2 [shape = 'u8[32768]{0}', space=vmem, size = 0x8000, scoped, tag = 'input window, operand 3, single buffered']
    #allocation3 [shape = 's32[1]{0}', space=sflag, size = 0x4, scoped, tag = 'scoped memory for dqn_forward.1']
    #allocation4 [shape = 'u8[32768]{0}', space=vmem, size = 0x8000, scoped, tag = 'input window, operand 5, single buffered']
    #allocation5 [shape = 's32[1]{0}', space=sflag, size = 0x4, scoped, tag = 'scoped memory for dqn_forward.1']
    %12 = vsyncpa [#allocation3], 0
    %13 = vsyncpa [#allocation5], 0
    // Predicated region
    $region2: #{dqn_forward.1} parent=1 // pred_check
      _
    $region3: #{dqn_forward.1} parent=1 // pred_check_branch
      %15 = sbr.rel (0) target = $region5
    $region4: #{dqn_forward.1} parent=1 // pred_region
      _
    $region5: #{dqn_forward.1} parent=1 // pred_fallthru
      _
    // Predicated region
    $region6: #{dqn_forward.1} parent=1 // pred_check
      _
    $region7: #{dqn_forward.1} parent=1 // pred_check_branch
      %17 = sbr.rel (0) target = $region9
    $region8: #{dqn_forward.1} parent=1 // pred_region
      _
    $region9: #{dqn_forward.1} parent=1 // pred_fallthru
      _
    // Predicated region
    $region10: #{dqn_forward.1} parent=1 // pred_check
      _
    $region11: #{dqn_forward.1} parent=1 // pred_check_branch
      %19 = sbr.rel (0) target = $region13
    $region12: #{dqn_forward.1} parent=1 // pred_region
      _
    $region13: #{dqn_forward.1} parent=1 // pred_fallthru
      _
    // Predicated region
    $region14: #{dqn_forward.1} parent=1 // pred_check
      _
    $region15: #{dqn_forward.1} parent=1 // pred_check_branch
      %21 = sbr.rel (0) target = $region17
    $region16: #{dqn_forward.1} parent=1 // pred_region
      %s23 = ssub.s32 1024, 1024
      %24 = vsyncadd [#allocation3], %s23
      %s25 = sshll.u32 [#allocation2], 4
      %s26 = int_to_ptr.vmem [resolvable:$true] %s25
      %31 = dma.hbm_to_vmem [thread:$0]  %s3, 1024, %s26, [#allocation3], 64, 64, 4
    $region17: #{dqn_forward.1} parent=1 // pred_fallthru
      _
    // Predicated region
    $region18: #{dqn_forward.1} parent=1 // pred_check
      _
    $region19: #{dqn_forward.1} parent=1 // pred_check_branch
      %33 = sbr.rel (0) target = $region21
    $region20: #{dqn_forward.1} parent=1 // pred_region
      _
    $region21: #{dqn_forward.1} parent=1 // pred_fallthru
      _
    // Predicated region
    $region22: #{dqn_forward.1} parent=1 // pred_check
      _
    $region23: #{dqn_forward.1} parent=1 // pred_check_branch
      %35 = sbr.rel (0) target = $region25
    $region24: #{dqn_forward.1} parent=1 // pred_region
      %s37 = ssub.s32 1024, 1024
      %38 = vsyncadd [#allocation5], %s37
      %s39 = sshll.u32 [#allocation4], 4
      %s40 = int_to_ptr.vmem [resolvable:$true] %s39
      %45 = dma.hbm_to_vmem [thread:$0]  %s5, 1024, %s40, [#allocation5], 64, 64, 4
    $region25: #{dqn_forward.1} parent=1 // pred_fallthru
      _
    // Predicated region
    $region26: #{dqn_forward.1} parent=1 // pred_check
      _
    $region27: #{dqn_forward.1} parent=1 // pred_check_branch
      %47 = sbr.rel (0) target = $region29
    $region28: #{dqn_forward.1} parent=1 // pred_region
      _
    $region29: #{dqn_forward.1} parent=1 // pred_fallthru
      _
    // Predicated region
    $region30: #{dqn_forward.1} parent=1 // pred_check
      _
    $region31: #{dqn_forward.1} parent=1 // pred_check_branch
      %49 = sbr.rel (0) target = $region33
    $region32: #{dqn_forward.1} parent=1 // pred_region
      %50 = dma.done [#allocation3], 1024
    $region33: #{dqn_forward.1} parent=1 // pred_fallthru
      _
    // Predicated region
    $region34: #{dqn_forward.1} parent=1 // pred_check
      _
    $region35: #{dqn_forward.1} parent=1 // pred_check_branch
      %52 = sbr.rel (0) target = $region37
    $region36: #{dqn_forward.1} parent=1 // pred_region
      %53 = dma.done [#allocation5], 1024
    $region37: #{dqn_forward.1} parent=1 // pred_fallthru
      _
    %v55 = vld [vmem:[%s0] sm:$0xff]
    %v56 = vld [vmem:[%s2] sm:$0x1]
    %v57 = vld [vmem:[%s1] sm:$0x1]
    %59 = vset.pattern.permute.xlu0 0
    %60 = vperm.xlu0 %59, %v55
    %v61 = vpop.permute.xlu0 %60
    %v63 = vlaneseq
    %v64 = vshrl.u32 %v63, 7
    %v65 = vsub.s32 0, %v64
    %v66 = vrot.slane %v57, %v65
    %v67 = vmul.f32 %v61, %v66
    %v69 = vlaneseq
    %v70 = vshrl.u32 %v69, 7
    %v71 = vsub.s32 0, %v70
    %v72 = vrot.slane %v56, %v71
    %v74 = vadd.f32 %v72, %v67
    %v75 = vld [vmem:[%s1 + $0x1] sm:$0x1]
    %76 = vset.pattern.permute.xlu0 1
    %77 = vperm.xlu0 %76, %v55
    %v78 = vpop.permute.xlu0 %77
    %v80 = vlaneseq
    %v81 = vshrl.u32 %v80, 7
    %v82 = vsub.s32 0, %v81
    %v83 = vrot.slane %v75, %v82
    %v84 = vmul.f32 %v78, %v83
    %v85 = vadd.f32 %v74, %v84
    %v86 = vld [vmem:[%s1 + $0x2] sm:$0x1]
    %87 = vset.pattern.permute.xlu0 2
    %88 = vperm.xlu0 %87, %v55
    %v89 = vpop.permute.xlu0 %88
    %v91 = vlaneseq
    %v92 = vshrl.u32 %v91, 7
    %v93 = vsub.s32 0, %v92
    %v94 = vrot.slane %v86, %v93
    %v95 = vmul.f32 %v89, %v94
    %v96 = vadd.f32 %v85, %v95
    %v97 = vld [vmem:[%s1 + $0x3] sm:$0x1]
    %98 = vset.pattern.permute.xlu0 3
    %99 = vperm.xlu0 %98, %v55
    %v100 = vpop.permute.xlu0 %99
    %v102 = vlaneseq
    %v103 = vshrl.u32 %v102, 7
    %v104 = vsub.s32 0, %v103
    %v105 = vrot.slane %v97, %v104
    %v106 = vmul.f32 %v100, %v105
    %v107 = vadd.f32 %v96, %v106
    %v108 = vmax.f32 %v107, 0.0
    %v109 = vpack.c.bf16 %v108, %v108
    %v110 = vld [vmem:[#allocation2] sm:$0xf]
    %v111 = vld [vmem:[#allocation2 + $0x4] sm:$0xf]
    %v112 = vld [vmem:[#allocation2 + $0x8] sm:$0xf]
    %v113 = vld [vmem:[#allocation2 + $0xc] sm:$0xf]
    %v114 = vld [vmem:[#allocation2 + $0x10] sm:$0xf]
    %v115 = vld [vmem:[#allocation2 + $0x14] sm:$0xf]
    %v116 = vld [vmem:[#allocation2 + $0x18] sm:$0xf]
    %v117 = vld [vmem:[#allocation2 + $0x1c] sm:$0xf]
    %v118 = vld [vmem:[#allocation2 + $0x20] sm:$0xf]
    %v119 = vld [vmem:[#allocation2 + $0x24] sm:$0xf]
    %v120 = vld [vmem:[#allocation2 + $0x28] sm:$0xf]
    %v121 = vld [vmem:[#allocation2 + $0x2c] sm:$0xf]
    %v122 = vld [vmem:[#allocation2 + $0x30] sm:$0xf]
    %v123 = vld [vmem:[#allocation2 + $0x34] sm:$0xf]
    %v124 = vld [vmem:[#allocation2 + $0x38] sm:$0xf]
    %v125 = vld [vmem:[#allocation2 + $0x3c] sm:$0xf]
    %v126 = vld [vmem:[%s4] sm:$0x1]
    %v128 = vlaneseq
    %v129 = vshrl.u32 %v128, 7
    %v130 = vsub.s32 0, %v129
    %v131 = vrot.slane %v126, %v130
    %v149 = vunpack.c.l.b16 %v110
    %v150 = vunpack.c.l.b16 %v111
    %v151 = vunpack.c.l.b16 %v112
    %v152 = vunpack.c.l.b16 %v113
    %v153 = vunpack.c.l.b16 %v114
    %v154 = vunpack.c.l.b16 %v115
    %v155 = vunpack.c.l.b16 %v116
    %v156 = vunpack.c.l.b16 %v117
    %v157 = vunpack.c.l.b16 %v118
    %v158 = vunpack.c.l.b16 %v119
    %v159 = vunpack.c.l.b16 %v120
    %v160 = vunpack.c.l.b16 %v121
    %v161 = vunpack.c.l.b16 %v122
    %v162 = vunpack.c.l.b16 %v123
    %v163 = vunpack.c.l.b16 %v124
    %v164 = vunpack.c.l.b16 %v125
    %v165 = vpack.c.b16 %v150, %v149
    %v166 = vpack.c.b16 %v152, %v151
    %v167 = vpack.c.b16 %v154, %v153
    %v168 = vpack.c.b16 %v156, %v155
    %v169 = vpack.c.b16 %v158, %v157
    %v170 = vpack.c.b16 %v160, %v159
    %v171 = vpack.c.b16 %v162, %v161
    %v172 = vpack.c.b16 %v164, %v163
    %181 = vmatprep.subr.bf16.mxu0 0
    %182 = vmatpush1.bf16.msra.mxu0 %v165
    %183 = vmatprep.subr.bf16.mxu0 0
    %184 = vmatpush1.bf16.msra.mxu0 %v166
    %185 = vmatprep.subr.bf16.mxu0 0
    %186 = vmatpush1.bf16.msra.mxu0 %v167
    %187 = vmatprep.subr.bf16.mxu0 0
    %188 = vmatpush1.bf16.msra.mxu0 %v168
    %189 = vmatprep.subr.bf16.mxu0 0
    %190 = vmatpush1.bf16.msra.mxu0 %v169
    %191 = vmatprep.subr.bf16.mxu0 0
    %192 = vmatpush1.bf16.msra.mxu0 %v170
    %193 = vmatprep.subr.bf16.mxu0 0
    %194 = vmatpush1.bf16.msra.mxu0 %v171
    %195 = vmatprep.subr.bf16.mxu0 0
    %196 = vmatpush1.bf16.msra.mxu0 %v172
    %197 = vmatprep.subr.bf16.mxu0 0
    %198 = vmatpush1.bf16.msra.mxu0 0
    %199 = vmatprep.subr.bf16.mxu0 0
    %200 = vmatpush1.bf16.msra.mxu0 0
    %201 = vmatprep.subr.bf16.mxu0 0
    %202 = vmatpush1.bf16.msra.mxu0 0
    %203 = vmatprep.subr.bf16.mxu0 0
    %204 = vmatpush1.bf16.msra.mxu0 0
    %205 = vmatprep.subr.bf16.mxu0 0
    %206 = vmatpush1.bf16.msra.mxu0 0
    %207 = vmatprep.subr.bf16.mxu0 0
    %208 = vmatpush1.bf16.msra.mxu0 0
    %209 = vmatprep.subr.bf16.mxu0 0
    %210 = vmatpush1.bf16.msra.mxu0 0
    %211 = vmatprep.subr.bf16.mxu0 0
    %212 = vmatpush1.bf16.msra.mxu0 0
    %213 = vmatprep.mubr.bf16.mxu0 0
    %214 = vmatmul.mubr.bf16.gmra.mrb[0].mxu0 %v109
    %v215 = vpop.f32.mrb[0].mxu0
    %v216 = vadd.f32 %v131, %v215
    %v217 = vpop.f32.mrb[0].mxu0
    %v218 = vpop.f32.mrb[0].mxu0
    %v219 = vpop.f32.mrb[0].mxu0
    %220 = vdwg.mxu0
    %v221 = vmax.f32 %v216, 0.0
    %v222 = vpack.c.bf16 %v221, %v221
    %v223 = vld [vmem:[#allocation4] sm:$0xf]
    %v224 = vld [vmem:[#allocation4 + $0x4] sm:$0xf]
    %v225 = vld [vmem:[#allocation4 + $0x8] sm:$0xf]
    %v226 = vld [vmem:[#allocation4 + $0xc] sm:$0xf]
    %v227 = vld [vmem:[#allocation4 + $0x10] sm:$0xf]
    %v228 = vld [vmem:[#allocation4 + $0x14] sm:$0xf]
    %v229 = vld [vmem:[#allocation4 + $0x18] sm:$0xf]
    %v230 = vld [vmem:[#allocation4 + $0x1c] sm:$0xf]
    %v231 = vld [vmem:[#allocation4 + $0x20] sm:$0xf]
    %v232 = vld [vmem:[#allocation4 + $0x24] sm:$0xf]
    %v233 = vld [vmem:[#allocation4 + $0x28] sm:$0xf]
    %v234 = vld [vmem:[#allocation4 + $0x2c] sm:$0xf]
    %v235 = vld [vmem:[#allocation4 + $0x30] sm:$0xf]
    %v236 = vld [vmem:[#allocation4 + $0x34] sm:$0xf]
    %v237 = vld [vmem:[#allocation4 + $0x38] sm:$0xf]
    %v238 = vld [vmem:[#allocation4 + $0x3c] sm:$0xf]
    %v255 = vunpack.c.l.b16 %v223
    %v256 = vunpack.c.l.b16 %v224
    %v257 = vunpack.c.l.b16 %v225
    %v258 = vunpack.c.l.b16 %v226
    %v259 = vunpack.c.l.b16 %v227
    %v260 = vunpack.c.l.b16 %v228
    %v261 = vunpack.c.l.b16 %v229
    %v262 = vunpack.c.l.b16 %v230
    %v263 = vunpack.c.l.b16 %v231
    %v264 = vunpack.c.l.b16 %v232
    %v265 = vunpack.c.l.b16 %v233
    %v266 = vunpack.c.l.b16 %v234
    %v267 = vunpack.c.l.b16 %v235
    %v268 = vunpack.c.l.b16 %v236
    %v269 = vunpack.c.l.b16 %v237
    %v270 = vunpack.c.l.b16 %v238
    %v271 = vpack.c.b16 %v256, %v255
    %v272 = vpack.c.b16 %v258, %v257
    %v273 = vpack.c.b16 %v260, %v259
    %v274 = vpack.c.b16 %v262, %v261
    %v275 = vpack.c.b16 %v264, %v263
    %v276 = vpack.c.b16 %v266, %v265
    %v277 = vpack.c.b16 %v268, %v267
    %v278 = vpack.c.b16 %v270, %v269
    %287 = vmatprep.subr.bf16.mxu0 0
    %288 = vmatpush1.bf16.msra.mxu0 %v271
    %289 = vmatprep.subr.bf16.mxu0 0
    %290 = vmatpush1.bf16.msra.mxu0 %v272
    %291 = vmatprep.subr.bf16.mxu0 0
    %292 = vmatpush1.bf16.msra.mxu0 %v273
    %293 = vmatprep.subr.bf16.mxu0 0
    %294 = vmatpush1.bf16.msra.mxu0 %v274
    %295 = vmatprep.subr.bf16.mxu0 0
    %296 = vmatpush1.bf16.msra.mxu0 %v275
    %297 = vmatprep.subr.bf16.mxu0 0
    %298 = vmatpush1.bf16.msra.mxu0 %v276
    %299 = vmatprep.subr.bf16.mxu0 0
    %300 = vmatpush1.bf16.msra.mxu0 %v277
    %301 = vmatprep.subr.bf16.mxu0 0
    %302 = vmatpush1.bf16.msra.mxu0 %v278
    %303 = vmatprep.subr.bf16.mxu0 0
    %304 = vmatpush1.bf16.msra.mxu0 0
    %305 = vmatprep.subr.bf16.mxu0 0
    %306 = vmatpush1.bf16.msra.mxu0 0
    %307 = vmatprep.subr.bf16.mxu0 0
    %308 = vmatpush1.bf16.msra.mxu0 0
    %309 = vmatprep.subr.bf16.mxu0 0
    %310 = vmatpush1.bf16.msra.mxu0 0
    %311 = vmatprep.subr.bf16.mxu0 0
    %312 = vmatpush1.bf16.msra.mxu0 0
    %313 = vmatprep.subr.bf16.mxu0 0
    %314 = vmatpush1.bf16.msra.mxu0 0
    %315 = vmatprep.subr.bf16.mxu0 0
    %316 = vmatpush1.bf16.msra.mxu0 0
    %317 = vmatprep.subr.bf16.mxu0 0
    %318 = vmatpush1.bf16.msra.mxu0 0
    %319 = vmatprep.mubr.bf16.mxu0 0
    %320 = vmatmul.mubr.bf16.gmra.mrb[0].mxu0 %v222
    %v321 = vpop.f32.mrb[0].mxu0
    %v322 = vadd.f32 0.0, %v321
    %v323 = vpop.f32.mrb[0].mxu0
    %v324 = vpop.f32.mrb[0].mxu0
    %v325 = vpop.f32.mrb[0].mxu0
    %326 = vdwg.mxu0
    %v327 = vld [vmem:[%s6] sm:$0x1]
    %v329 = vlaneseq
    %v330 = vshrl.u32 %v329, 7
    %v331 = vsub.s32 0, %v330
    %v332 = vrot.slane %v327, %v331
    %v334 = vadd.f32 %v322, %v332
    %vm335 = vcmask 15360
    %336 = vst.msk [vmem:[%s7] sm:$0xff] %vm335, %v334
    // Predicated region
    $region38: #{dqn_forward.1} parent=1 // pred_check
      _
    $region39: #{dqn_forward.1} parent=1 // pred_check_branch
      %338 = sbr.rel (0) target = $region41
    $region40: #{dqn_forward.1} parent=1 // pred_region
      _
    $region41: #{dqn_forward.1} parent=1 // pred_fallthru
      _
    // Predicated region
    $region42: #{dqn_forward.1} parent=1 // pred_check
      _
    $region43: #{dqn_forward.1} parent=1 // pred_check_branch
      %340 = sbr.rel (0) target = $region45
    $region44: #{dqn_forward.1} parent=1 // pred_region
      _
    $region45: #{dqn_forward.1} parent=1 // pred_fallthru
      _
    %341 = vsyncpa [#allocation3], 1
    %342 = vsyncpa [#allocation5], 1

</llo_original>
